<compile_context>
chip_gen: v7x
topology: tpu7x:2x2x1
jax: 0.10.0
libtpu: 0.0.40
codegen_flags: <defaults>
</compile_context>

<pallas_src>
import functools

import jax
import jax.numpy as jnp
from jax.experimental import pallas as pl
from jax.experimental.pallas import tpu as pltpu

NEG_SLOPE = 0.01  # nn.LeakyReLU() default
LANE = 128
SUBLANE = 8
HIDDEN = 256


def _cdiv(a, b):
    return -(-a // b)


def _round_up(x, m):
    return _cdiv(x, m) * m


def _leaky_relu(x):
    # For slope < 1, max(x, slope*x) == LeakyReLU(x): mul+max (2 VALU ops)
    # instead of cmp+mul+select (3).
    return jnp.maximum(x, NEG_SLOPE * x)


def dqn_kernel(g_ref, w1_ref, b1_ref, w2_ref, b2_ref, w3_ref, b3_ref, o_ref):
    # Whole forward fused: 3 MXU matmuls (f32 accumulation) + VPU leaky-relu.
    g = g_ref[...]
    h = jnp.dot(g, w1_ref[...], preferred_element_type=jnp.float32) + b1_ref[...]
    h = _leaky_relu(h).astype(w2_ref.dtype)
    h = jnp.dot(h, w2_ref[...], preferred_element_type=jnp.float32) + b2_ref[...]
    h = _leaky_relu(h).astype(w3_ref.dtype)
    o = jnp.dot(h, w3_ref[...], preferred_element_type=jnp.float32) + b3_ref[...]
    o_ref[...] = o.astype(o_ref.dtype)


def prepare_params(params, goal_dim, compute_dtype=jnp.bfloat16):
    """One-time host-side param transform for the kernel:
      * fold the cat([goal, goal]) duplication into W1 (PyTorch-forward quirk:
        `x` is overwritten by `goal`),
      * zero-pad the output layer to a lane-dense 128-wide slab,
      * cast matmul operands to the compute dtype (bf16 by default; biases
        stay f32 and are added on the f32 accumulator).
    NOTE: inter-layer activations are also carried in `compute_dtype`."""
    w1, b1, w2, b2, w3, b3 = params
    assert w1.shape[0] == 2 * goal_dim, (
        "W1 folding assumes the forward feeds cat([goal, goal], 1)")
    w1_eff = w1[:goal_dim, :] + w1[goal_dim:, :]
    action = w3.shape[1]
    n_pad = _round_up(action, LANE)
    w3_p = jnp.pad(w3, ((0, 0), (0, n_pad - action)))
    b3_p = jnp.pad(b3, ((0, 0), (0, n_pad - action)))
    cast = lambda a: a.astype(compute_dtype)
    kernel_params = (
        cast(w1_eff), b1.astype(jnp.float32),
        cast(w2), b2.astype(jnp.float32),
        cast(w3_p), b3_p.astype(jnp.float32),
    )
    return kernel_params, action


def _choose_batch_tiling(B, tile_b):
    """Pick (tb, b_pad, n_tiles):
      * n_tiles >= ceil(B / tile_b) so per-tile VMEM stays bounded,
      * n_tiles >= 2 whenever B allows it, so the 'parallel' batch axis can be
        split across v7x's two TensorCores,
      * tb = round_up(ceil(B / n_tiles), 8) so padding waste is at most one
        sublane per tile (not up to a full dead tile)."""
    n_tiles = max(1, _cdiv(B, tile_b))
    if B > SUBLANE:
        n_tiles = max(n_tiles, 2)
    tb = _round_up(_cdiv(B, n_tiles), SUBLANE)
    n_tiles = _cdiv(B, tb)
    return tb, tb * n_tiles, n_tiles


def _vmem_limit_bytes(tb, goal_dim, n_pad, weight_bytes, in_isz, out_isz):
    """Scoped-VMEM request: double-buffered goal/out tiles + resident weights
    + generous headroom for the f32 (tb, 256) intermediates. Clamped to
    [32 MiB, 56 MiB]: above the v5e/v6e defaults, below v7x's 64 MiB/TC."""
    working = (2 * tb * goal_dim * in_isz        # goal tile, double-buffered
               + 2 * tb * n_pad * out_isz        # out tile, double-buffered
               + 2 * weight_bytes                # weights/biases (worst case)
               + 6 * tb * HIDDEN * 4)            # f32 activation intermediates
    return int(min(max(2 * working, 32 << 20), 56 << 20))


@functools.partial(jax.jit, static_argnames=("action", "tile_b"))
def dqn_forward(x, goal, kernel_params, *, action, tile_b=2048):
    """Matches DQN.forward(x, goal). `x` is ignored (the original overwrites
    it with `goal`). `kernel_params` comes from prepare_params().
    For tiny per-step inference batches (B ~ 4-8) the pallas_call is pure
    launch overhead -- batch environment steps before calling this."""
    del x  # faithful to the PyTorch forward: x is overwritten by goal
    w1, b1, w2, b2, w3, b3 = kernel_params
    compute_dtype = w1.dtype
    out_dtype = compute_dtype       # bf16 slab halves the padded HBM writeback
    B, goal_dim = goal.shape
    n_pad = w3.shape[1]

    tb, b_pad, n_tiles = _choose_batch_tiling(B, tile_b)
    g = goal.astype(compute_dtype)
    if b_pad != B:
        g = jnp.pad(g, ((0, b_pad - B), (0, 0)))

    weight_bytes = sum(int(a.size) * jnp.dtype(a.dtype).itemsize
                       for a in kernel_params)
    vmem_limit = _vmem_limit_bytes(
        tb, goal_dim, n_pad, weight_bytes,
        jnp.dtype(compute_dtype).itemsize, jnp.dtype(out_dtype).itemsize)

    const = lambda shape: pl.BlockSpec(shape, lambda i: (0, 0))
    out = pl.pallas_call(
        dqn_kernel,
        out_shape=jax.ShapeDtypeStruct((b_pad, n_pad), out_dtype),
        grid_spec=pltpu.PrefetchScalarGridSpec(
            num_scalar_prefetch=0,
            grid=(n_tiles,),
            in_specs=[
                pl.BlockSpec((tb, goal_dim), lambda i: (i, 0)),  # goal tile
                const(w1.shape), const(b1.shape),                # VMEM-resident
                const(w2.shape), const(b2.shape),
                const(w3.shape), const(b3.shape),
            ],
            out_specs=pl.BlockSpec((tb, n_pad), lambda i: (i, 0)),
        ),
        compiler_params=pltpu.CompilerParams(
            dimension_semantics=("parallel",),  # batch axis -> both TCs on v7x
            vmem_limit_bytes=vmem_limit,
        ),
    )(g, w1, b1, w2, b2, w3, b3)
    return out[:B, :action].astype(jnp.float32)


def init_params(key, obs, action, hidden=HIDDEN):
    """PyTorch-Linear-like uniform fan-in init; weights stored as (in, out)
    i.e. already transposed for `x @ W`."""
    ks = jax.random.split(key, 6)

    def linear(kw, kb, fan_in, fan_out):
        bound = 1.0 / jnp.sqrt(fan_in)
        w = jax.random.uniform(kw, (fan_in, fan_out), jnp.float32, -bound, bound)
        b = jax.random.uniform(kb, (1, fan_out), jnp.float32, -bound, bound)
        return w, b

    w1, b1 = linear(ks[0], ks[1], obs, hidden)
    w2, b2 = linear(ks[2], ks[3], hidden, hidden)
    w3, b3 = linear(ks[4], ks[5], hidden, action)
    return (w1, b1, w2, b2, w3, b3)


def dqn_reference(goal, params):
    w1, b1, w2, b2, w3, b3 = params
    x = jnp.concatenate([goal, goal], axis=1)
    h = _leaky_relu(x @ w1 + b1)
    h = _leaky_relu(h @ w2 + b2)
    return h @ w3 + b3


if __name__ == "__main__":
    key = jax.random.PRNGKey(0)
    k_x, k_goal, k_param, k_mid, k_big = jax.random.split(key, 5)

    goal_dim = 8
    obs = 2 * goal_dim   # forward feeds cat([goal, goal], 1)
    action = 4
    B = 4

    params = init_params(k_param, obs, action)
    x = jax.random.normal(k_x, (B, goal_dim), jnp.float32)       # ignored
    goal = jax.random.normal(k_goal, (B, goal_dim), jnp.float32)

    # Small-batch path, f32 operands (exact-parity check).
    p_f32, act = prepare_params(params, goal_dim, jnp.float32)
    out = jax.block_until_ready(dqn_forward(x, goal, p_f32, action=act))
    ref = dqn_reference(goal, params)
    assert out.shape == (B, action)
    assert jnp.allclose(out, ref, atol=1e-4, rtol=1e-4), float(
        jnp.max(jnp.abs(out - ref)))

    # Awkward batch (260): bounded-padding tiling, >=2 grid steps, bf16 path.
    p_bf16, act = prepare_params(params, goal_dim)   # bf16 default
    B_mid = 260
    goal_mid = jax.random.normal(k_mid, (B_mid, goal_dim), jnp.float32)
    out_mid = jax.block_until_ready(
        dqn_forward(goal_mid, goal_mid, p_bf16, action=act))
    ref_mid = dqn_reference(goal_mid, params)
    assert out_mid.shape == (B_mid, action)
    assert jnp.allclose(out_mid, ref_mid, atol=7e-2, rtol=7e-2), float(
        jnp.max(jnp.abs(out_mid - ref_mid)))

    # Training-sized batch: bf16 operands/output slab, f32 MXU accumulation,
    # gridded batch (2 tiles -> both TensorCores on v7x).
    B_big = 2048
    goal_big = jax.random.normal(k_big, (B_big, goal_dim), jnp.float32)
    out_big = jax.block_until_ready(
        dqn_forward(goal_big, goal_big, p_bf16, action=act))
    ref_big = dqn_reference(goal_big, params)
    assert out_big.shape == (B_big, action)
    assert jnp.allclose(out_big, ref_big, atol=7e-2, rtol=7e-2), float(
        jnp.max(jnp.abs(out_big - ref_big)))

    print("KERNEL_OK")
</pallas_src>

<mosaic_0001>
module attributes {stable_mosaic.version = 11 : i64} {
  func.func @dqn_kernel(%arg0: i32, %arg1: memref<8x8xf32, #tpu.memory_space<vmem>>, %arg2: memref<8x256xf32, #tpu.memory_space<vmem>>, %arg3: memref<1x256xf32, #tpu.memory_space<vmem>>, %arg4: memref<256x256xf32, #tpu.memory_space<vmem>>, %arg5: memref<1x256xf32, #tpu.memory_space<vmem>>, %arg6: memref<256x128xf32, #tpu.memory_space<vmem>>, %arg7: memref<1x128xf32, #tpu.memory_space<vmem>>, %arg8: memref<8x128xf32, #tpu.memory_space<vmem>>) attributes {dimension_semantics = [#tpu.dimension_semantics<parallel>], iteration_bounds = array<i64: 1>, scalar_prefetch = 0 : i64, scratch_operands = 0 : i64, tpu.core_type = #tpu.core_type<tc>, window_params = [{transform_indices = @transform_0, window_bounds = array<i64: 8, 8>}, {pipeline_mode = #tpu.pipeline_mode<synchronous>, transform_indices = @transform_1, window_bounds = array<i64: 8, 256>}, {pipeline_mode = #tpu.pipeline_mode<synchronous>, transform_indices = @transform_2, window_bounds = array<i64: 1, 256>}, {pipeline_mode = #tpu.pipeline_mode<synchronous>, transform_indices = @transform_3, window_bounds = array<i64: 256, 256>}, {pipeline_mode = #tpu.pipeline_mode<synchronous>, transform_indices = @transform_4, window_bounds = array<i64: 1, 256>}, {pipeline_mode = #tpu.pipeline_mode<synchronous>, transform_indices = @transform_5, window_bounds = array<i64: 256, 128>}, {pipeline_mode = #tpu.pipeline_mode<synchronous>, transform_indices = @transform_6, window_bounds = array<i64: 1, 128>}, {transform_indices = @transform_7, window_bounds = array<i64: 8, 128>}]} {
    %c0 = arith.constant 0 : index
    %c0_0 = arith.constant 0 : index
    %0 = vector.load %arg1[%c0, %c0_0] : memref<8x8xf32, #tpu.memory_space<vmem>>, vector<8x8xf32>
    %c0_1 = arith.constant 0 : index
    %c0_2 = arith.constant 0 : index
    %1 = vector.load %arg2[%c0_1, %c0_2] : memref<8x256xf32, #tpu.memory_space<vmem>>, vector<8x256xf32>
    %cst = arith.constant dense<0.000000e+00> : vector<8x256xf32>
    %2 = tpu.matmul %0, %1, %cst {dimension_numbers = #tpu.dot_dimension_numbers<[1], [0], [0], [1], [0, 0, 1, 1], [], []>} : vector<8x8xf32>, vector<8x256xf32>, vector<8x256xf32> -> vector<8x256xf32>
    %c0_3 = arith.constant 0 : index
    %c0_4 = arith.constant 0 : index
    %3 = vector.load %arg3[%c0_3, %c0_4] : memref<1x256xf32, #tpu.memory_space<vmem>>, vector<1x256xf32>
    %4 = vector.broadcast %3 : vector<1x256xf32> to vector<8x256xf32>
    %5 = arith.addf %2, %4 : vector<8x256xf32>
    %cst_5 = arith.constant 0.00999999977 : f32
    %6 = vector.broadcast %cst_5 : f32 to vector<8x256xf32>
    %7 = arith.mulf %6, %5 : vector<8x256xf32>
    %8 = arith.maximumf %5, %7 : vector<8x256xf32>
    %c0_6 = arith.constant 0 : index
    %c0_7 = arith.constant 0 : index
    %9 = vector.load %arg4[%c0_6, %c0_7] : memref<256x256xf32, #tpu.memory_space<vmem>>, vector<256x256xf32>
    %cst_8 = arith.constant dense<0.000000e+00> : vector<8x256xf32>
    %10 = tpu.matmul %8, %9, %cst_8 {dimension_numbers = #tpu.dot_dimension_numbers<[1], [0], [0], [1], [0, 0, 1, 1], [], []>} : vector<8x256xf32>, vector<256x256xf32>, vector<8x256xf32> -> vector<8x256xf32>
    %c0_9 = arith.constant 0 : index
    %c0_10 = arith.constant 0 : index
    %11 = vector.load %arg5[%c0_9, %c0_10] : memref<1x256xf32, #tpu.memory_space<vmem>>, vector<1x256xf32>
    %12 = vector.broadcast %11 : vector<1x256xf32> to vector<8x256xf32>
    %13 = arith.addf %10, %12 : vector<8x256xf32>
    %cst_11 = arith.constant 0.00999999977 : f32
    %14 = vector.broadcast %cst_11 : f32 to vector<8x256xf32>
    %15 = arith.mulf %14, %13 : vector<8x256xf32>
    %16 = arith.maximumf %13, %15 : vector<8x256xf32>
    %c0_12 = arith.constant 0 : index
    %c0_13 = arith.constant 0 : index
    %17 = vector.load %arg6[%c0_12, %c0_13] : memref<256x128xf32, #tpu.memory_space<vmem>>, vector<256x128xf32>
    %cst_14 = arith.constant dense<0.000000e+00> : vector<8x128xf32>
    %18 = tpu.matmul %16, %17, %cst_14 {dimension_numbers = #tpu.dot_dimension_numbers<[1], [0], [0], [1], [0, 0, 1, 1], [], []>} : vector<8x256xf32>, vector<256x128xf32>, vector<8x128xf32> -> vector<8x128xf32>
    %c0_15 = arith.constant 0 : index
    %c0_16 = arith.constant 0 : index
    %19 = vector.load %arg7[%c0_15, %c0_16] : memref<1x128xf32, #tpu.memory_space<vmem>>, vector<1x128xf32>
    %20 = vector.broadcast %19 : vector<1x128xf32> to vector<8x128xf32>
    %21 = arith.addf %18, %20 : vector<8x128xf32>
    %c0_17 = arith.constant 0 : index
    %c0_18 = arith.constant 0 : index
    %22 = vector.load %arg8[%c0_17, %c0_18] : memref<8x128xf32, #tpu.memory_space<vmem>>, vector<8x128xf32>
    tpu.vector_store %arg8[%c0_17, %c0_18], %21 {strides = array<i32>} : memref<8x128xf32, #tpu.memory_space<vmem>>, vector<8x128xf32>,
    return
  }
  func.func @transform_0(%arg0: i32) -> (i32, i32) {
    %c0_i32 = arith.constant 0 : i32
    %c0_i32_0 = arith.constant 0 : i32
    return %arg0, %c0_i32 : i32, i32
  }
  func.func @transform_1(%arg0: i32) -> (i32, i32) {
    %c0_i32 = arith.constant 0 : i32
    %c0_i32_0 = arith.constant 0 : i32
    %c0_i32_1 = arith.constant 0 : i32
    return %c0_i32, %c0_i32_0 : i32, i32
  }
  func.func @transform_2(%arg0: i32) -> (i32, i32) {
    %c0_i32 = arith.constant 0 : i32
    %c0_i32_0 = arith.constant 0 : i32
    %c0_i32_1 = arith.constant 0 : i32
    return %c0_i32, %c0_i32_0 : i32, i32
  }
  func.func @transform_3(%arg0: i32) -> (i32, i32) {
    %c0_i32 = arith.constant 0 : i32
    %c0_i32_0 = arith.constant 0 : i32
    %c0_i32_1 = arith.constant 0 : i32
    return %c0_i32, %c0_i32_0 : i32, i32
  }
  func.func @transform_4(%arg0: i32) -> (i32, i32) {
    %c0_i32 = arith.constant 0 : i32
    %c0_i32_0 = arith.constant 0 : i32
    %c0_i32_1 = arith.constant 0 : i32
    return %c0_i32, %c0_i32_0 : i32, i32
  }
  func.func @transform_5(%arg0: i32) -> (i32, i32) {
    %c0_i32 = arith.constant 0 : i32
    %c0_i32_0 = arith.constant 0 : i32
    %c0_i32_1 = arith.constant 0 : i32
    return %c0_i32, %c0_i32_0 : i32, i32
  }
  func.func @transform_6(%arg0: i32) -> (i32, i32) {
    %c0_i32 = arith.constant 0 : i32
    %c0_i32_0 = arith.constant 0 : i32
    %c0_i32_1 = arith.constant 0 : i32
    return %c0_i32, %c0_i32_0 : i32, i32
  }
  func.func @transform_7(%arg0: i32) -> (i32, i32) {
    %c0_i32 = arith.constant 0 : i32
    %c0_i32_0 = arith.constant 0 : i32
    return %arg0, %c0_i32 : i32, i32
  }
}

</mosaic_0001>

<llo_original>
// kernel: dqn_forward.1
$region0: #{dqn_forward.1}
  #allocation0 [shape = 'u32[]', space=smem, size = 0x4, offset = 0x4, fixed_abs, tag = 'smem constant byte address 0x4 - core index']
  #allocation1 [shape = 'u32[144,128]{1,0:T(1,128)}', space=vmem, size = 0x12000, scoped, tag = 'internal scratch']
  %s0 = inlined_call_operand.vmem [shape: f32[8,8], index: 0, kind: input, shape index: {}]
  %s1 = inlined_call_operand.vmem [shape: f32[8,256], index: 1, kind: input, shape index: {}]
  %s2 = inlined_call_operand.vmem [shape: f32[1,256], index: 2, kind: input, shape index: {}]
  %s3 = inlined_call_operand.hbm [shape: f32[256,256], index: 3, kind: input, shape index: {}]
  %s4 = inlined_call_operand.vmem [shape: f32[1,256], index: 4, kind: input, shape index: {}]
  %s5 = inlined_call_operand.hbm [shape: f32[256,128], index: 5, kind: input, shape index: {}]
  %s6 = inlined_call_operand.vmem [shape: f32[1,128], index: 6, kind: input, shape index: {}]
  %s7 = inlined_call_operand.vmem [shape: f32[8,128], index: 7, kind: output, shape index: {}]
  %s8 = sld [smem:[#allocation0]]
  $region46: #{dqn_forward.1} parent=0
    _
  %s10 = ssub.s32 1, %s8
  %s11 = scalar_select 0, %s10, %s8
  $region1: #{dqn_forward.1} parent=0
    #allocation2 [shape = 'u8[262144]{0}', space=vmem, size = 0x40000, scoped, tag = 'input window, operand 3, single buffered']
    #allocation3 [shape = 's32[1]{0}', space=sflag, size = 0x4, scoped, tag = 'scoped memory for dqn_forward.1']
    #allocation4 [shape = 'u8[131072]{0}', space=vmem, size = 0x20000, scoped, tag = 'input window, operand 5, single buffered']
    #allocation5 [shape = 's32[1]{0}', space=sflag, size = 0x4, scoped, tag = 'scoped memory for dqn_forward.1']
    %12 = vsyncpa [#allocation3], 0
    %13 = vsyncpa [#allocation5], 0
    // Predicated region
    $region2: #{dqn_forward.1} parent=1 // pred_check
      _
    $region3: #{dqn_forward.1} parent=1 // pred_check_branch
      %15 = sbr.rel (0) target = $region5
    $region4: #{dqn_forward.1} parent=1 // pred_region
      _
    $region5: #{dqn_forward.1} parent=1 // pred_fallthru
      _
    // Predicated region
    $region6: #{dqn_forward.1} parent=1 // pred_check
      _
    $region7: #{dqn_forward.1} parent=1 // pred_check_branch
      %17 = sbr.rel (0) target = $region9
    $region8: #{dqn_forward.1} parent=1 // pred_region
      _
    $region9: #{dqn_forward.1} parent=1 // pred_fallthru
      _
    // Predicated region
    $region10: #{dqn_forward.1} parent=1 // pred_check
      _
    $region11: #{dqn_forward.1} parent=1 // pred_check_branch
      %19 = sbr.rel (0) target = $region13
    $region12: #{dqn_forward.1} parent=1 // pred_region
      _
    $region13: #{dqn_forward.1} parent=1 // pred_fallthru
      _
    // Predicated region
    $region14: #{dqn_forward.1} parent=1 // pred_check
      _
    $region15: #{dqn_forward.1} parent=1 // pred_check_branch
      %21 = sbr.rel (0) target = $region17
    $region16: #{dqn_forward.1} parent=1 // pred_region
      %s23 = ssub.s32 8192, 8192
      %24 = vsyncadd [#allocation3], %s23
      %s25 = sshll.u32 [#allocation2], 4
      %s26 = int_to_ptr.vmem [resolvable:$true] %s25
      %31 = dma.hbm_to_vmem [thread:$0]  %s3, 8192, %s26, [#allocation3], 256, 256, 16
    $region17: #{dqn_forward.1} parent=1 // pred_fallthru
      _
    // Predicated region
    $region18: #{dqn_forward.1} parent=1 // pred_check
      _
    $region19: #{dqn_forward.1} parent=1 // pred_check_branch
      %33 = sbr.rel (0) target = $region21
    $region20: #{dqn_forward.1} parent=1 // pred_region
      _
    $region21: #{dqn_forward.1} parent=1 // pred_fallthru
      _
    // Predicated region
    $region22: #{dqn_forward.1} parent=1 // pred_check
      _
    $region23: #{dqn_forward.1} parent=1 // pred_check_branch
      %35 = sbr.rel (0) target = $region25
    $region24: #{dqn_forward.1} parent=1 // pred_region
      %s37 = ssub.s32 4096, 4096
      %38 = vsyncadd [#allocation5], %s37
      %s39 = sshll.u32 [#allocation4], 4
      %s40 = int_to_ptr.vmem [resolvable:$true] %s39
      %45 = dma.hbm_to_vmem [thread:$0]  %s5, 4096, %s40, [#allocation5], 128, 128, 8
    $region25: #{dqn_forward.1} parent=1 // pred_fallthru
      _
    // Predicated region
    $region26: #{dqn_forward.1} parent=1 // pred_check
      _
    $region27: #{dqn_forward.1} parent=1 // pred_check_branch
      %47 = sbr.rel (0) target = $region29
    $region28: #{dqn_forward.1} parent=1 // pred_region
      _
    $region29: #{dqn_forward.1} parent=1 // pred_fallthru
      _
    // Predicated region
    $region30: #{dqn_forward.1} parent=1 // pred_check
      _
    $region31: #{dqn_forward.1} parent=1 // pred_check_branch
      %49 = sbr.rel (0) target = $region33
    $region32: #{dqn_forward.1} parent=1 // pred_region
      %50 = dma.done [#allocation3], 8192
    $region33: #{dqn_forward.1} parent=1 // pred_fallthru
      _
    // Predicated region
    $region34: #{dqn_forward.1} parent=1 // pred_check
      _
    $region35: #{dqn_forward.1} parent=1 // pred_check_branch
      %52 = sbr.rel (0) target = $region37
    $region36: #{dqn_forward.1} parent=1 // pred_region
      %53 = dma.done [#allocation5], 4096
    $region37: #{dqn_forward.1} parent=1 // pred_fallthru
      _
    %v54 = vld [vmem:[%s0] sm:$0xff]
    %v55 = vld [vmem:[%s1] sm:$0xff]
    %v56 = vld [vmem:[%s1 + $0x8] sm:$0xff]
    %v57 = vld [vmem:[%s2] sm:$0x3]
    %v59 = vlaneseq
    %v60 = vshrl.u32 %v59, 7
    %v61 = vsub.s32 0, %v60
    %v62 = vrot.slane %v57, %v61
    %v63 = vlaneseq
    %v64 = vshrl.u32 %v63, 7
    %v65 = vsub.s32 1, %v64
    %v66 = vrot.slane %v57, %v65
    %vm69 = vcmask 64512
    %v71 = vsel %vm69, %v54, 0
    %73 = vmatprep.subr.mxu0 %v56
    %74 = vmatpush1.msra.mxu0 %v55
    %75 = vmatprep.subr.mxu0 0.0
    %76 = vmatpush1.msra.mxu0 0.0
    %77 = vmatprep.subr.mxu0 0.0
    %78 = vmatpush1.msra.mxu0 0.0
    %79 = vmatprep.subr.mxu0 0.0
    %80 = vmatpush1.msra.mxu0 0.0
    %81 = vmatprep.subr.mxu0 0.0
    %82 = vmatpush1.msra.mxu0 0.0
    %83 = vmatprep.subr.mxu0 0.0
    %84 = vmatpush1.msra.mxu0 0.0
    %85 = vmatprep.subr.mxu0 0.0
    %86 = vmatpush1.msra.mxu0 0.0
    %87 = vmatprep.subr.mxu0 0.0
    %88 = vmatpush1.msra.mxu0 0.0
    %89 = vmatprep.subr.mxu0 0.0
    %90 = vmatpush1.msra.mxu0 0.0
    %91 = vmatprep.subr.mxu0 0.0
    %92 = vmatpush1.msra.mxu0 0.0
    %93 = vmatprep.subr.mxu0 0.0
    %94 = vmatpush1.msra.mxu0 0.0
    %95 = vmatprep.subr.mxu0 0.0
    %96 = vmatpush1.msra.mxu0 0.0
    %97 = vmatprep.subr.mxu0 0.0
    %98 = vmatpush1.msra.mxu0 0.0
    %99 = vmatprep.subr.mxu0 0.0
    %100 = vmatpush1.msra.mxu0 0.0
    %101 = vmatprep.subr.mxu0 0.0
    %102 = vmatpush1.msra.mxu0 0.0
    %103 = vmatprep.subr.mxu0 0.0
    %104 = vmatpush1.msra.mxu0 0.0
    %105 = vmatprep.subr.mxu0 0.0
    %106 = vmatpush1.msra.mxu0 0.0
    %107 = vmatprep.subr.mxu0 0.0
    %108 = vmatpush1.msra.mxu0 0.0
    %109 = vmatprep.subr.mxu0 0.0
    %110 = vmatpush1.msra.mxu0 0.0
    %111 = vmatprep.subr.mxu0 0.0
    %112 = vmatpush1.msra.mxu0 0.0
    %113 = vmatprep.subr.mxu0 0.0
    %114 = vmatpush1.msra.mxu0 0.0
    %115 = vmatprep.subr.mxu0 0.0
    %116 = vmatpush1.msra.mxu0 0.0
    %117 = vmatprep.subr.mxu0 0.0
    %118 = vmatpush1.msra.mxu0 0.0
    %119 = vmatprep.subr.mxu0 0.0
    %120 = vmatpush1.msra.mxu0 0.0
    %121 = vmatprep.subr.mxu0 0.0
    %122 = vmatpush1.msra.mxu0 0.0
    %123 = vmatprep.subr.mxu0 0.0
    %124 = vmatpush1.msra.mxu0 0.0
    %125 = vmatprep.subr.mxu0 0.0
    %126 = vmatpush1.msra.mxu0 0.0
    %127 = vmatprep.subr.mxu0 0.0
    %128 = vmatpush1.msra.mxu0 0.0
    %129 = vmatprep.subr.mxu0 0.0
    %130 = vmatpush1.msra.mxu0 0.0
    %131 = vmatprep.subr.mxu0 0.0
    %132 = vmatpush1.msra.mxu0 0.0
    %133 = vmatprep.subr.mxu0 0.0
    %134 = vmatpush1.msra.mxu0 0.0
    %135 = vmatprep.subr.mxu0 0.0
    %136 = vmatpush1.msra.mxu0 0.0
    %137 = vmatprep.mubr.f32.mxu0 0.0
    %138 = vmatmul.mubr.f32.gmra.mrb[0].mxu0 %v71
    %v139 = vpop.f32.mrb[0].mxu0
    %v140 = vadd.f32 %v62, %v139
    %v141 = vpop.f32.mrb[0].mxu0
    %v142 = vadd.f32 %v66, %v141
    %143 = vdwg.mxu0
    %v144 = vmul.f32 %v140, 0.01
    %v145 = vmul.f32 %v142, 0.01
    %v146 = vmax.f32 %v140, %v144
    %v147 = vmax.f32 %v142, %v145
    %v148 = vld [vmem:[#allocation2] sm:$0xff]
    %v149 = vld [vmem:[#allocation2 + $0x8] sm:$0xff]
    %v150 = vld [vmem:[#allocation2 + $0x10] sm:$0xff]
    %v151 = vld [vmem:[#allocation2 + $0x18] sm:$0xff]
    %v152 = vld [vmem:[#allocation2 + $0x20] sm:$0xff]
    %v153 = vld [vmem:[#allocation2 + $0x28] sm:$0xff]
    %v154 = vld [vmem:[#allocation2 + $0x30] sm:$0xff]
    %v155 = vld [vmem:[#allocation2 + $0x38] sm:$0xff]
    %v156 = vld [vmem:[#allocation2 + $0x40] sm:$0xff]
    %v157 = vld [vmem:[#allocation2 + $0x48] sm:$0xff]
    %v158 = vld [vmem:[#allocation2 + $0x50] sm:$0xff]
    %v159 = vld [vmem:[#allocation2 + $0x58] sm:$0xff]
    %v160 = vld [vmem:[#allocation2 + $0x60] sm:$0xff]
    %v161 = vld [vmem:[#allocation2 + $0x68] sm:$0xff]
    %v162 = vld [vmem:[#allocation2 + $0x70] sm:$0xff]
    %v163 = vld [vmem:[#allocation2 + $0x78] sm:$0xff]
    %v164 = vld [vmem:[#allocation2 + $0x80] sm:$0xff]
    %v165 = vld [vmem:[#allocation2 + $0x88] sm:$0xff]
    %v166 = vld [vmem:[#allocation2 + $0x90] sm:$0xff]
    %v167 = vld [vmem:[#allocation2 + $0x98] sm:$0xff]
    %v168 = vld [vmem:[#allocation2 + $0xa0] sm:$0xff]
    %v169 = vld [vmem:[#allocation2 + $0xa8] sm:$0xff]
    %v170 = vld [vmem:[#allocation2 + $0xb0] sm:$0xff]
    %v171 = vld [vmem:[#allocation2 + $0xb8] sm:$0xff]
    %v172 = vld [vmem:[#allocation2 + $0xc0] sm:$0xff]
    %v173 = vld [vmem:[#allocation2 + $0xc8] sm:$0xff]
    %v174 = vld [vmem:[#allocation2 + $0xd0] sm:$0xff]
    %v175 = vld [vmem:[#allocation2 + $0xd8] sm:$0xff]
    %v176 = vld [vmem:[#allocation2 + $0xe0] sm:$0xff]
    %v177 = vld [vmem:[#allocation2 + $0xe8] sm:$0xff]
    %v178 = vld [vmem:[#allocation2 + $0xf0] sm:$0xff]
    %v179 = vld [vmem:[#allocation2 + $0xf8] sm:$0xff]
    %v180 = vld [vmem:[#allocation2 + $0x100] sm:$0xff]
    %v181 = vld [vmem:[#allocation2 + $0x108] sm:$0xff]
    %v182 = vld [vmem:[#allocation2 + $0x110] sm:$0xff]
    %v183 = vld [vmem:[#allocation2 + $0x118] sm:$0xff]
    %v184 = vld [vmem:[#allocation2 + $0x120] sm:$0xff]
    %v185 = vld [vmem:[#allocation2 + $0x128] sm:$0xff]
    %v186 = vld [vmem:[#allocation2 + $0x130] sm:$0xff]
    %v187 = vld [vmem:[#allocation2 + $0x138] sm:$0xff]
    %v188 = vld [vmem:[#allocation2 + $0x140] sm:$0xff]
    %v189 = vld [vmem:[#allocation2 + $0x148] sm:$0xff]
    %v190 = vld [vmem:[#allocation2 + $0x150] sm:$0xff]
    %v191 = vld [vmem:[#allocation2 + $0x158] sm:$0xff]
    %v192 = vld [vmem:[#allocation2 + $0x160] sm:$0xff]
    %v193 = vld [vmem:[#allocation2 + $0x168] sm:$0xff]
    %v194 = vld [vmem:[#allocation2 + $0x170] sm:$0xff]
    %v195 = vld [vmem:[#allocation2 + $0x178] sm:$0xff]
    %v196 = vld [vmem:[#allocation2 + $0x180] sm:$0xff]
    %v197 = vld [vmem:[#allocation2 + $0x188] sm:$0xff]
    %v198 = vld [vmem:[#allocation2 + $0x190] sm:$0xff]
    %v199 = vld [vmem:[#allocation2 + $0x198] sm:$0xff]
    %v200 = vld [vmem:[#allocation2 + $0x1a0] sm:$0xff]
    %v201 = vld [vmem:[#allocation2 + $0x1a8] sm:$0xff]
    %v202 = vld [vmem:[#allocation2 + $0x1b0] sm:$0xff]
    %v203 = vld [vmem:[#allocation2 + $0x1b8] sm:$0xff]
    %v204 = vld [vmem:[#allocation2 + $0x1c0] sm:$0xff]
    %v205 = vld [vmem:[#allocation2 + $0x1c8] sm:$0xff]
    %v206 = vld [vmem:[#allocation2 + $0x1d0] sm:$0xff]
    %v207 = vld [vmem:[#allocation2 + $0x1d8] sm:$0xff]
    %v208 = vld [vmem:[#allocation2 + $0x1e0] sm:$0xff]
    %v209 = vld [vmem:[#allocation2 + $0x1e8] sm:$0xff]
    %v210 = vld [vmem:[#allocation2 + $0x1f0] sm:$0xff]
    %v211 = vld [vmem:[#allocation2 + $0x1f8] sm:$0xff]
    %v212 = vld [vmem:[%s4] sm:$0x3]
    %v214 = vlaneseq
    %v215 = vshrl.u32 %v214, 7
    %v216 = vsub.s32 0, %v215
    %v217 = vrot.slane %v212, %v216
    %v218 = vlaneseq
    %v219 = vshrl.u32 %v218, 7
    %v220 = vsub.s32 1, %v219
    %v221 = vrot.slane %v212, %v220
    %224 = vmatprep.subr.mxu0 %v149
    %225 = vmatpush1.msra.mxu0 %v148
    %226 = vmatprep.subr.mxu0 %v151
    %227 = vmatpush1.msra.mxu0 %v150
    %228 = vmatprep.subr.mxu0 %v153
    %229 = vmatpush1.msra.mxu0 %v152
    %230 = vmatprep.subr.mxu0 %v155
    %231 = vmatpush1.msra.mxu0 %v154
    %232 = vmatprep.subr.mxu0 %v157
    %233 = vmatpush1.msra.mxu0 %v156
    %234 = vmatprep.subr.mxu0 %v159
    %235 = vmatpush1.msra.mxu0 %v158
    %236 = vmatprep.subr.mxu0 %v161
    %237 = vmatpush1.msra.mxu0 %v160
    %238 = vmatprep.subr.mxu0 %v163
    %239 = vmatpush1.msra.mxu0 %v162
    %240 = vmatprep.subr.mxu0 %v165
    %241 = vmatpush1.msra.mxu0 %v164
    %242 = vmatprep.subr.mxu0 %v167
    %243 = vmatpush1.msra.mxu0 %v166
    %244 = vmatprep.subr.mxu0 %v169
    %245 = vmatpush1.msra.mxu0 %v168
    %246 = vmatprep.subr.mxu0 %v171
    %247 = vmatpush1.msra.mxu0 %v170
    %248 = vmatprep.subr.mxu0 %v173
    %249 = vmatpush1.msra.mxu0 %v172
    %250 = vmatprep.subr.mxu0 %v175
    %251 = vmatpush1.msra.mxu0 %v174
    %252 = vmatprep.subr.mxu0 %v177
    %253 = vmatpush1.msra.mxu0 %v176
    %254 = vmatprep.subr.mxu0 %v179
    %255 = vmatpush1.msra.mxu0 %v178
    %256 = vmatprep.subr.mxu0 %v181
    %257 = vmatpush1.msra.mxu0 %v180
    %258 = vmatprep.subr.mxu0 %v183
    %259 = vmatpush1.msra.mxu0 %v182
    %260 = vmatprep.subr.mxu0 %v185
    %261 = vmatpush1.msra.mxu0 %v184
    %262 = vmatprep.subr.mxu0 %v187
    %263 = vmatpush1.msra.mxu0 %v186
    %264 = vmatprep.subr.mxu0 %v189
    %265 = vmatpush1.msra.mxu0 %v188
    %266 = vmatprep.subr.mxu0 %v191
    %267 = vmatpush1.msra.mxu0 %v190
    %268 = vmatprep.subr.mxu0 %v193
    %269 = vmatpush1.msra.mxu0 %v192
    %270 = vmatprep.subr.mxu0 %v195
    %271 = vmatpush1.msra.mxu0 %v194
    %272 = vmatprep.subr.mxu0 %v197
    %273 = vmatpush1.msra.mxu0 %v196
    %274 = vmatprep.subr.mxu0 %v199
    %275 = vmatpush1.msra.mxu0 %v198
    %276 = vmatprep.subr.mxu0 %v201
    %277 = vmatpush1.msra.mxu0 %v200
    %278 = vmatprep.subr.mxu0 %v203
    %279 = vmatpush1.msra.mxu0 %v202
    %280 = vmatprep.subr.mxu0 %v205
    %281 = vmatpush1.msra.mxu0 %v204
    %282 = vmatprep.subr.mxu0 %v207
    %283 = vmatpush1.msra.mxu0 %v206
    %284 = vmatprep.subr.mxu0 %v209
    %285 = vmatpush1.msra.mxu0 %v208
    %286 = vmatprep.subr.mxu0 %v211
    %287 = vmatpush1.msra.mxu0 %v210
    %288 = vmatprep.mubr.f32.mxu0 %v147
    %289 = vmatmul.mubr.f32.gmra.mrb[0].mxu0 %v146
    %v290 = vpop.f32.mrb[0].mxu0
    %v291 = vadd.f32 %v217, %v290
    %v292 = vpop.f32.mrb[0].mxu0
    %v293 = vadd.f32 %v221, %v292
    %294 = vdwg.mxu0
    %v295 = vmul.f32 %v291, 0.01
    %v296 = vmul.f32 %v293, 0.01
    %v297 = vmax.f32 %v291, %v295
    %v298 = vmax.f32 %v293, %v296
    %v299 = vld [vmem:[#allocation4] sm:$0xff]
    %v300 = vld [vmem:[#allocation4 + $0x8] sm:$0xff]
    %v301 = vld [vmem:[#allocation4 + $0x10] sm:$0xff]
    %v302 = vld [vmem:[#allocation4 + $0x18] sm:$0xff]
    %v303 = vld [vmem:[#allocation4 + $0x20] sm:$0xff]
    %v304 = vld [vmem:[#allocation4 + $0x28] sm:$0xff]
    %v305 = vld [vmem:[#allocation4 + $0x30] sm:$0xff]
    %v306 = vld [vmem:[#allocation4 + $0x38] sm:$0xff]
    %v307 = vld [vmem:[#allocation4 + $0x40] sm:$0xff]
    %v308 = vld [vmem:[#allocation4 + $0x48] sm:$0xff]
    %v309 = vld [vmem:[#allocation4 + $0x50] sm:$0xff]
    %v310 = vld [vmem:[#allocation4 + $0x58] sm:$0xff]
    %v311 = vld [vmem:[#allocation4 + $0x60] sm:$0xff]
    %v312 = vld [vmem:[#allocation4 + $0x68] sm:$0xff]
    %v313 = vld [vmem:[#allocation4 + $0x70] sm:$0xff]
    %v314 = vld [vmem:[#allocation4 + $0x78] sm:$0xff]
    %v315 = vld [vmem:[#allocation4 + $0x80] sm:$0xff]
    %v316 = vld [vmem:[#allocation4 + $0x88] sm:$0xff]
    %v317 = vld [vmem:[#allocation4 + $0x90] sm:$0xff]
    %v318 = vld [vmem:[#allocation4 + $0x98] sm:$0xff]
    %v319 = vld [vmem:[#allocation4 + $0xa0] sm:$0xff]
    %v320 = vld [vmem:[#allocation4 + $0xa8] sm:$0xff]
    %v321 = vld [vmem:[#allocation4 + $0xb0] sm:$0xff]
    %v322 = vld [vmem:[#allocation4 + $0xb8] sm:$0xff]
    %v323 = vld [vmem:[#allocation4 + $0xc0] sm:$0xff]
    %v324 = vld [vmem:[#allocation4 + $0xc8] sm:$0xff]
    %v325 = vld [vmem:[#allocation4 + $0xd0] sm:$0xff]
    %v326 = vld [vmem:[#allocation4 + $0xd8] sm:$0xff]
    %v327 = vld [vmem:[#allocation4 + $0xe0] sm:$0xff]
    %v328 = vld [vmem:[#allocation4 + $0xe8] sm:$0xff]
    %v329 = vld [vmem:[#allocation4 + $0xf0] sm:$0xff]
    %v330 = vld [vmem:[#allocation4 + $0xf8] sm:$0xff]
    %v331 = vld [vmem:[%s6] sm:$0x1]
    %v333 = vlaneseq
    %v334 = vshrl.u32 %v333, 7
    %v335 = vsub.s32 0, %v334
    %v336 = vrot.slane %v331, %v335
    %338 = vmatprep.subr.mxu0 0.0
    %339 = vmatpush1.msra.mxu0 %v299
    %340 = vmatprep.subr.mxu0 0.0
    %341 = vmatpush1.msra.mxu0 %v300
    %342 = vmatprep.subr.mxu0 0.0
    %343 = vmatpush1.msra.mxu0 %v301
    %344 = vmatprep.subr.mxu0 0.0
    %345 = vmatpush1.msra.mxu0 %v302
    %346 = vmatprep.subr.mxu0 0.0
    %347 = vmatpush1.msra.mxu0 %v303
    %348 = vmatprep.subr.mxu0 0.0
    %349 = vmatpush1.msra.mxu0 %v304
    %350 = vmatprep.subr.mxu0 0.0
    %351 = vmatpush1.msra.mxu0 %v305
    %352 = vmatprep.subr.mxu0 0.0
    %353 = vmatpush1.msra.mxu0 %v306
    %354 = vmatprep.subr.mxu0 0.0
    %355 = vmatpush1.msra.mxu0 %v307
    %356 = vmatprep.subr.mxu0 0.0
    %357 = vmatpush1.msra.mxu0 %v308
    %358 = vmatprep.subr.mxu0 0.0
    %359 = vmatpush1.msra.mxu0 %v309
    %360 = vmatprep.subr.mxu0 0.0
    %361 = vmatpush1.msra.mxu0 %v310
    %362 = vmatprep.subr.mxu0 0.0
    %363 = vmatpush1.msra.mxu0 %v311
    %364 = vmatprep.subr.mxu0 0.0
    %365 = vmatpush1.msra.mxu0 %v312
    %366 = vmatprep.subr.mxu0 0.0
    %367 = vmatpush1.msra.mxu0 %v313
    %368 = vmatprep.subr.mxu0 0.0
    %369 = vmatpush1.msra.mxu0 %v314
    %370 = vmatprep.subr.mxu0 0.0
    %371 = vmatpush1.msra.mxu0 %v315
    %372 = vmatprep.subr.mxu0 0.0
    %373 = vmatpush1.msra.mxu0 %v316
    %374 = vmatprep.subr.mxu0 0.0
    %375 = vmatpush1.msra.mxu0 %v317
    %376 = vmatprep.subr.mxu0 0.0
    %377 = vmatpush1.msra.mxu0 %v318
    %378 = vmatprep.subr.mxu0 0.0
    %379 = vmatpush1.msra.mxu0 %v319
    %380 = vmatprep.subr.mxu0 0.0
    %381 = vmatpush1.msra.mxu0 %v320
    %382 = vmatprep.subr.mxu0 0.0
    %383 = vmatpush1.msra.mxu0 %v321
    %384 = vmatprep.subr.mxu0 0.0
    %385 = vmatpush1.msra.mxu0 %v322
    %386 = vmatprep.subr.mxu0 0.0
    %387 = vmatpush1.msra.mxu0 %v323
    %388 = vmatprep.subr.mxu0 0.0
    %389 = vmatpush1.msra.mxu0 %v324
    %390 = vmatprep.subr.mxu0 0.0
    %391 = vmatpush1.msra.mxu0 %v325
    %392 = vmatprep.subr.mxu0 0.0
    %393 = vmatpush1.msra.mxu0 %v326
    %394 = vmatprep.subr.mxu0 0.0
    %395 = vmatpush1.msra.mxu0 %v327
    %396 = vmatprep.subr.mxu0 0.0
    %397 = vmatpush1.msra.mxu0 %v328
    %398 = vmatprep.subr.mxu0 0.0
    %399 = vmatpush1.msra.mxu0 %v329
    %400 = vmatprep.subr.mxu0 0.0
    %401 = vmatpush1.msra.mxu0 %v330
    %402 = vmatprep.mubr.f32.mxu0 %v298
    %403 = vmatmul.mubr.f32.gmra.mrb[0].mxu0 %v297
    %v404 = vpop.f32.mrb[0].mxu0
    %v405 = vadd.f32 %v336, %v404
    %v406 = vpop.f32.mrb[0].mxu0
    %407 = vdwg.mxu0
    %408 = vst [vmem:[%s7] sm:$0xff] %v405
    // Predicated region
    $region38: #{dqn_forward.1} parent=1 // pred_check
      _
    $region39: #{dqn_forward.1} parent=1 // pred_check_branch
      %410 = sbr.rel (0) target = $region41
    $region40: #{dqn_forward.1} parent=1 // pred_region
      _
    $region41: #{dqn_forward.1} parent=1 // pred_fallthru
      _
    // Predicated region
    $region42: #{dqn_forward.1} parent=1 // pred_check
      _
    $region43: #{dqn_forward.1} parent=1 // pred_check_branch
      %412 = sbr.rel (0) target = $region45
    $region44: #{dqn_forward.1} parent=1 // pred_region
      _
    $region45: #{dqn_forward.1} parent=1 // pred_fallthru
      _
    %413 = vsyncpa [#allocation3], 1
    %414 = vsyncpa [#allocation5], 1

</llo_original>
